<compile_context>
chip_gen: v6e
topology: v6e:2x2x1
jax: 0.10.0
libtpu: 0.0.40
codegen_flags: <defaults>
</compile_context>

<pallas_src>
import functools

import jax
import jax.numpy as jnp
from jax import lax
from jax.experimental import pallas as pl
from jax.experimental.pallas import tpu as pltpu

LANE = 128
BOX_LANES = 4                       # x1, y1, x2, y2 interleaved along lanes
BOXES_PER_ROW = LANE // BOX_LANES   # 32 boxes per 128-lane row
CHUNK_ROWS = 32                     # rows per inner fori_loop step (1024 boxes, 4 vregs/input)
MAX_TILE_ROWS = 8192                # rows per grid step (256K boxes, 4 MiB per input block)


def _cdiv(a, b):
    return -(-a // b)


def _round_up(a, b):
    return _cdiv(a, b) * b


def _num_tensorcores():
    """TensorCores addressable by the leading 'parallel' grid axis (1 on v5e/v6e)."""
    try:
        info = pltpu.get_tpu_info()
        for attr in ("num_cores", "core_count", "num_tensorcores", "num_cores_per_chip"):
            v = getattr(info, attr, None)
            if isinstance(v, int) and 1 <= v <= 8:
                return max(1, min(int(v), 2))
    except Exception:
        pass
    try:
        kind = jax.devices()[0].device_kind.lower()
    except Exception:
        return 1
    # v4 / v5p megacore and v7x expose 2 TensorCores per device; v5e / v6e are single-TC.
    if any(tag in kind for tag in ("v7", "v5p", "v4")):
        return 2
    return 1


def _iou_loss_kernel(pred_ref, target_ref, weight_ref, out_ref, *, eps, compute_wpos):
    # pred/target/weight refs: (tile_rows, 128) f32, coordinates lane-interleaved (4 per box).
    # out_ref: (1, n_stats, 8, 128) f32 resident accumulator block (one per core).
    @pl.when(pl.program_id(1) == 0)
    def _():
        out_ref[...] = jnp.zeros_like(out_ref)

    tile_rows = pred_ref.shape[0]
    num_chunks = tile_rows // CHUNK_ROWS
    n_stats = 4 if compute_wpos else 3

    # Loop-invariant lane masks / roll-direction probe (hoisted, built once per grid step).
    lane_ids = lax.broadcasted_iota(jnp.int32, (CHUNK_ROWS, LANE), 1)
    lmod = lane_ids & 3
    is_lt = lmod < 2            # lanes holding x1 / y1
    is_c0 = lmod == 0           # lane holding x1 (the per-box scalar slot)
    # pltpu.roll's rotation direction convention is probed once with an iota so the kernel is
    # correct either way; the redundant roll rides the otherwise-idle XLU slot.
    expect = ((lane_ids + 2) & (LANE - 1)).astype(jnp.float32)
    pulls_up = pltpu.roll(lane_ids.astype(jnp.float32), LANE - 2, axis=1) == expect

    def pull_up(x, k):
        """Value from lane (l + k) % 128, independent of the roll direction convention."""
        a = pltpu.roll(x, LANE - k, axis=1)
        b = pltpu.roll(x, k, axis=1)
        return jnp.where(pulls_up, a, b)

    def reduce_rows(x):
        """(CHUNK_ROWS, 128) -> (8, 128) via tile-aligned 8-row partial sums (pure VALU)."""
        acc = x[0:8]
        for r in range(8, CHUNK_ROWS, 8):
            acc = acc + x[r:r + 8]
        return acc

    def body(i, accs):
        r0 = pl.multiple_of(i * CHUNK_ROWS, CHUNK_ROWS)
        p = pred_ref[pl.ds(r0, CHUNK_ROWS), :]
        t = target_ref[pl.ds(r0, CHUNK_ROWS), :]
        w = weight_ref[pl.ds(r0, CHUNK_ROWS), :]

        # aligned bbox_overlaps with the legacy "+1" pixel convention, computed directly on the
        # lane-interleaved layout: per box, lanes [4b .. 4b+3] = [x1, y1, x2, y2].
        corner = jnp.where(is_lt, jnp.maximum(p, t), jnp.minimum(p, t))   # lt @ %4==0,1 ; rb @ 2,3
        wh = jnp.maximum(pull_up(corner, 2) - corner + 1.0, 0.0)          # w @ %4==0, h @ %4==1
        overlap = wh * pull_up(wh, 1)                                     # valid @ %4==0
        dp = pull_up(p, 2) - p + 1.0
        area_p = dp * pull_up(dp, 1)
        dt = pull_up(t, 2) - t + 1.0
        area_t = dt * pull_up(dt, 1)
        union = area_p + area_t - overlap
        # Exact divide kept (pl.reciprocal(approx=True) is a v7x micro-opt, perturbs numerics).
        # Degenerate *positive* boxes may yield inf/nan here, matching the reference behavior.
        ious = jnp.maximum(overlap / union, eps)                          # .clamp(min=eps)
        loss = -jnp.log(ious)                                             # valid @ %4==0

        pos = jnp.logical_and(is_c0, w > 0.0)                             # weight[:, 0] > 0
        new = [
            accs[0] + reduce_rows(jnp.where(pos, loss, 0.0)),             # masked -log(iou) sum
            accs[1] + reduce_rows(p * w),                                 # all-negative fallback
            accs[2] + reduce_rows(jnp.where(pos, 1.0, 0.0)),              # num positive boxes
        ]
        if compute_wpos:
            new.append(accs[3] + reduce_rows(jnp.where(w > 0.0, 1.0, 0.0)))  # sum(weight > 0)
        return tuple(new)

    zero = jnp.zeros((8, LANE), jnp.float32)
    unroll = 2 if num_chunks % 2 == 0 else 1
    accs = lax.fori_loop(0, num_chunks, body, (zero,) * n_stats, unroll=unroll)
    for k in range(n_stats):
        out_ref[0, k] += accs[k]


def iou_loss_pallas(pred, target, weight, *, style='naive', beta=0.2, eps=1e-3,
                    loss_weight=1.0, avg_factor=None):
    """pred, target, weight: (N, 4) float arrays (PyTorch convention)."""
    if style != 'naive':
        raise NotImplementedError("only style='naive' is implemented")
    del beta  # unused by the naive style

    pred = jnp.asarray(pred, jnp.float32)
    target = jnp.asarray(target, jnp.float32)
    weight = jnp.asarray(weight, jnp.float32)
    n = pred.shape[0]

    # ---- tiling plan --------------------------------------------------------
    rows_needed = max(1, _cdiv(n, BOXES_PER_ROW))
    nc = _num_tensorcores()
    num_cores = nc if rows_needed >= nc * CHUNK_ROWS else 1
    tile_rows = min(MAX_TILE_ROWS, _round_up(_cdiv(rows_needed, num_cores), CHUNK_ROWS))
    steps = _cdiv(rows_needed, num_cores * tile_rows)
    rows_total = num_cores * steps * tile_rows

    def pack(x):
        # Free, contiguous view: (N, 4) -> (rows, 128) with coordinates lane-interleaved.
        # Only ragged N pays one pad pass; padded lanes carry weight == 0 and are inert.
        flat = x.reshape(-1)
        short = rows_total * LANE - flat.shape[0]
        if short:
            flat = jnp.pad(flat, (0, short))
        return flat.reshape(rows_total, LANE)

    pred_p, target_p, weight_p = pack(pred), pack(target), pack(weight)

    compute_wpos = avg_factor is None
    n_stats = 4 if compute_wpos else 3

    in_spec = pl.BlockSpec((tile_rows, LANE), lambda c, s: (c * steps + s, 0))
    out_spec = pl.BlockSpec((1, n_stats, 8, LANE), lambda c, s: (c, 0, 0, 0))

    partial = pl.pallas_call(
        functools.partial(_iou_loss_kernel, eps=float(eps), compute_wpos=compute_wpos),
        out_shape=jax.ShapeDtypeStruct((num_cores, n_stats, 8, LANE), jnp.float32),
        grid_spec=pltpu.PrefetchScalarGridSpec(
            num_scalar_prefetch=0,
            grid=(num_cores, steps),
            in_specs=[in_spec, in_spec, in_spec],
            out_specs=out_spec),
        compiler_params=pltpu.CompilerParams(
            dimension_semantics=("parallel", "arbitrary"),
            vmem_limit_bytes=48 * 1024 * 1024),
    )(pred_p, target_p, weight_p)

    stats = jnp.sum(partial, axis=(0, 2, 3))               # (n_stats,) tiny final reduction in XLA
    masked_sum, fallback, num_pos = stats[0], stats[1], stats[2]
    if avg_factor is None:
        avg_factor = stats[3] / 4.0 + 1e-6
    loss = jnp.where(num_pos > 0.0, masked_sum, fallback) / avg_factor
    return (loss_weight * loss)[None]                      # shape (1,), like .sum()[None]


def _iou_loss_ref(pred, target, weight, *, eps=1e-3, loss_weight=1.0, avg_factor=None):
    """Pure-JAX reference mirroring weighted_iou_loss(style='naive')."""
    pred = jnp.asarray(pred, jnp.float32)
    target = jnp.asarray(target, jnp.float32)
    weight = jnp.asarray(weight, jnp.float32)
    mask = weight[:, 0] > 0
    if avg_factor is None:
        avg_factor = jnp.sum(weight > 0) / 4.0 + 1e-6
    lt = jnp.maximum(pred[:, :2], target[:, :2])
    rb = jnp.minimum(pred[:, 2:], target[:, 2:])
    wh = jnp.maximum(rb - lt + 1.0, 0.0)
    overlap = wh[:, 0] * wh[:, 1]
    a1 = (pred[:, 2] - pred[:, 0] + 1.0) * (pred[:, 3] - pred[:, 1] + 1.0)
    a2 = (target[:, 2] - target[:, 0] + 1.0) * (target[:, 3] - target[:, 1] + 1.0)
    ious = jnp.maximum(overlap / (a1 + a2 - overlap), eps)
    loss = -jnp.log(ious)
    masked_sum = jnp.sum(jnp.where(mask, loss, 0.0))
    fallback = jnp.sum(pred * weight)
    out = jnp.where(jnp.any(mask), masked_sum, fallback) / avg_factor
    return (loss_weight * out)[None]


if __name__ == "__main__":
    # Module "parameters" (from __init__) set deterministically in-script:
    style, beta, eps, loss_weight = 'naive', 0.2, 1e-3, 1.0

    key = jax.random.PRNGKey(0)

    def make_inputs(k, n):
        k1, k2, k3, k4, k5 = jax.random.split(k, 5)
        p_xy = jax.random.uniform(k1, (n, 2), minval=0.0, maxval=50.0)
        p_wh = jax.random.uniform(k2, (n, 2), minval=1.0, maxval=20.0)
        pred = jnp.concatenate([p_xy, p_xy + p_wh], axis=-1)               # (n, 4)
        t_xy = p_xy + jax.random.uniform(k3, (n, 2), minval=-3.0, maxval=3.0)
        t_wh = jnp.maximum(p_wh + jax.random.uniform(k4, (n, 2), minval=-2.0, maxval=2.0), 1.0)
        target = jnp.concatenate([t_xy, t_xy + t_wh], axis=-1)             # (n, 4)
        w_row = (jax.random.uniform(k5, (n, 1)) > 0.5).astype(jnp.float32)
        weight = jnp.tile(w_row, (1, 4))                                   # (n, 4)
        return pred, target, weight

    k_a, k_b, k_c = jax.random.split(key, 3)

    # case 1: ragged N (pad path), possibly 2-core grid on multi-TC parts
    pred, target, weight = make_inputs(k_a, 2500)
    out = jax.block_until_ready(
        iou_loss_pallas(pred, target, weight, style=style, beta=beta,
                        eps=eps, loss_weight=loss_weight))
    ref = _iou_loss_ref(pred, target, weight, eps=eps, loss_weight=loss_weight)
    assert out.shape == (1,)
    assert jnp.allclose(out, ref, rtol=1e-4, atol=1e-5), (out, ref)

    # case 2: caller-supplied avg_factor (sum(weight > 0) accumulator skipped in-kernel)
    out2 = jax.block_until_ready(
        iou_loss_pallas(pred, target, weight, eps=eps, loss_weight=loss_weight,
                        avg_factor=321.0))
    ref2 = _iou_loss_ref(pred, target, weight, eps=eps, loss_weight=loss_weight,
                         avg_factor=321.0)
    assert jnp.allclose(out2, ref2, rtol=1e-4, atol=1e-5), (out2, ref2)

    # case 3: small single-chunk, single-core path (ragged tail)
    pred_s, target_s, weight_s = make_inputs(k_b, 200)
    out3 = jax.block_until_ready(
        iou_loss_pallas(pred_s, target_s, weight_s, eps=eps, loss_weight=loss_weight))
    ref3 = _iou_loss_ref(pred_s, target_s, weight_s, eps=eps, loss_weight=loss_weight)
    assert jnp.allclose(out3, ref3, rtol=1e-4, atol=1e-5), (out3, ref3)

    # case 4: 32-box-aligned N (copy-free reshape path, no pad)
    pred_a, target_a, weight_a = make_inputs(k_c, 1024)
    out4 = jax.block_until_ready(
        iou_loss_pallas(pred_a, target_a, weight_a, eps=eps, loss_weight=loss_weight))
    ref4 = _iou_loss_ref(pred_a, target_a, weight_a, eps=eps, loss_weight=loss_weight)
    assert jnp.allclose(out4, ref4, rtol=1e-4, atol=1e-5), (out4, ref4)

    print("KERNEL_OK")
</pallas_src>

<mosaic_0001>
module attributes {stable_mosaic.version = 11 : i64} {
  func.func @_iou_loss_kernel(%arg0: i32, %arg1: i32, %arg2: memref<96x128xf32, #tpu.memory_space<vmem>>, %arg3: memref<96x128xf32, #tpu.memory_space<vmem>>, %arg4: memref<96x128xf32, #tpu.memory_space<vmem>>, %arg5: memref<1x4x8x128xf32, #tpu.memory_space<vmem>>) attributes {dimension_semantics = [#tpu.dimension_semantics<parallel>, #tpu.dimension_semantics<arbitrary>], iteration_bounds = array<i64: 1, 1>, scalar_prefetch = 0 : i64, scratch_operands = 0 : i64, tpu.core_type = #tpu.core_type<tc>, window_params = [{transform_indices = @transform_0, window_bounds = array<i64: 96, 128>}, {transform_indices = @transform_1, window_bounds = array<i64: 96, 128>}, {transform_indices = @transform_2, window_bounds = array<i64: 96, 128>}, {transform_indices = @transform_3, window_bounds = array<i64: 1, 4, 8, 128>}]} {
    %c0_i32 = arith.constant 0 : i32
    %0 = arith.cmpi eq, %arg1, %c0_i32 : i32
    %1 = arith.extui %0 : i1 to i32
    %c0_i32_0 = arith.constant 0 : i32
    %2 = arith.cmpi ne, %1, %c0_i32_0 : i32
    scf.if %2 {
      %cst_34 = arith.constant 0.000000e+00 : f32
      %45 = vector.broadcast %cst_34 : f32 to vector<1x4x8x128xf32>
      %c0_35 = arith.constant 0 : index
      %c0_36 = arith.constant 0 : index
      %c0_37 = arith.constant 0 : index
      %c0_38 = arith.constant 0 : index
      %46 = vector.load %arg5[%c0_35, %c0_36, %c0_37, %c0_38] : memref<1x4x8x128xf32, #tpu.memory_space<vmem>>, vector<1x4x8x128xf32>
      tpu.vector_store %arg5[%c0_35, %c0_36, %c0_37, %c0_38], %45 {strides = array<i32>} : memref<1x4x8x128xf32, #tpu.memory_space<vmem>>, vector<1x4x8x128xf32>,
    } else {
    }
    %3 = tpu.iota {dimensions = array<i32: 1>} : vector<32x128xi32>
    %c3_i32 = arith.constant 3 : i32
    %4 = vector.broadcast %c3_i32 : i32 to vector<32x128xi32>
    %5 = arith.andi %3, %4 : vector<32x128xi32>
    %c2_i32 = arith.constant 2 : i32
    %6 = vector.broadcast %c2_i32 : i32 to vector<32x128xi32>
    %7 = arith.cmpi slt, %5, %6 : vector<32x128xi32>
    %c0_i32_1 = arith.constant 0 : i32
    %8 = vector.broadcast %c0_i32_1 : i32 to vector<32x128xi32>
    %9 = arith.cmpi eq, %5, %8 : vector<32x128xi32>
    %c2_i32_2 = arith.constant 2 : i32
    %10 = vector.broadcast %c2_i32_2 : i32 to vector<32x128xi32>
    %11 = arith.addi %3, %10 : vector<32x128xi32>
    %c127_i32 = arith.constant 127 : i32
    %12 = vector.broadcast %c127_i32 : i32 to vector<32x128xi32>
    %13 = arith.andi %11, %12 : vector<32x128xi32>
    %14 = arith.sitofp %13 : vector<32x128xi32> to vector<32x128xf32>
    %15 = arith.sitofp %3 : vector<32x128xi32> to vector<32x128xf32>
    %c126_i32 = arith.constant 126 : i32
    %16 = tpu.dynamic_rotate %15 by %c126_i32 dim 1 : vector<32x128xf32>, i32 -> vector<32x128xf32>
    %17 = arith.cmpf oeq, %16, %14 : vector<32x128xf32>
    %cst = arith.constant 0.000000e+00 : f32
    %18 = vector.broadcast %cst : f32 to vector<8x128xf32>
    %c0_i32_3 = arith.constant 0 : i32
    %c3_i32_4 = arith.constant 3 : i32
    %19 = arith.addi %c0_i32_3, %c3_i32_4 : i32
    %c1_i32 = arith.constant 1 : i32
    %20:4 = scf.for %arg6 = %c0_i32_3 to %19 step %c1_i32 iter_args(%arg7 = %18, %arg8 = %18, %arg9 = %18, %arg10 = %18) -> (vector<8x128xf32>, vector<8x128xf32>, vector<8x128xf32>, vector<8x128xf32>)  : i32 {
      %c32_i32 = arith.constant 32 : i32
      %45 = arith.muli %arg6, %c32_i32 : i32
      %46 = tpu.assume_multiple %45, 32 : i32
      %47 = arith.index_cast %46 : i32 to index
      %c0_34 = arith.constant 0 : index
      %48 = vector.load %arg2[%47, %c0_34] : memref<96x128xf32, #tpu.memory_space<vmem>>, vector<32x128xf32>
      %49 = arith.index_cast %46 : i32 to index
      %c0_35 = arith.constant 0 : index
      %50 = vector.load %arg3[%49, %c0_35] : memref<96x128xf32, #tpu.memory_space<vmem>>, vector<32x128xf32>
      %51 = arith.index_cast %46 : i32 to index
      %c0_36 = arith.constant 0 : index
      %52 = vector.load %arg4[%51, %c0_36] : memref<96x128xf32, #tpu.memory_space<vmem>>, vector<32x128xf32>
      %53 = arith.maximumf %48, %50 : vector<32x128xf32>
      %54 = arith.minimumf %48, %50 : vector<32x128xf32>
      %55 = arith.select %7, %53, %54 : vector<32x128xi1>, vector<32x128xf32>
      %c126_i32_37 = arith.constant 126 : i32
      %56 = tpu.dynamic_rotate %55 by %c126_i32_37 dim 1 : vector<32x128xf32>, i32 -> vector<32x128xf32>
      %c2_i32_38 = arith.constant 2 : i32
      %57 = tpu.dynamic_rotate %55 by %c2_i32_38 dim 1 : vector<32x128xf32>, i32 -> vector<32x128xf32>
      %58 = arith.select %17, %56, %57 : vector<32x128xi1>, vector<32x128xf32>
      %59 = arith.subf %58, %55 : vector<32x128xf32>
      %cst_39 = arith.constant 1.000000e+00 : f32
      %60 = vector.broadcast %cst_39 : f32 to vector<32x128xf32>
      %61 = arith.addf %59, %60 : vector<32x128xf32>
      %cst_40 = arith.constant 0.000000e+00 : f32
      %62 = vector.broadcast %cst_40 : f32 to vector<32x128xf32>
      %63 = arith.maximumf %61, %62 : vector<32x128xf32>
      %c127_i32_41 = arith.constant 127 : i32
      %64 = tpu.dynamic_rotate %63 by %c127_i32_41 dim 1 : vector<32x128xf32>, i32 -> vector<32x128xf32>
      %c1_i32_42 = arith.constant 1 : i32
      %65 = tpu.dynamic_rotate %63 by %c1_i32_42 dim 1 : vector<32x128xf32>, i32 -> vector<32x128xf32>
      %66 = arith.select %17, %64, %65 : vector<32x128xi1>, vector<32x128xf32>
      %67 = arith.mulf %63, %66 : vector<32x128xf32>
      %c126_i32_43 = arith.constant 126 : i32
      %68 = tpu.dynamic_rotate %48 by %c126_i32_43 dim 1 : vector<32x128xf32>, i32 -> vector<32x128xf32>
      %c2_i32_44 = arith.constant 2 : i32
      %69 = tpu.dynamic_rotate %48 by %c2_i32_44 dim 1 : vector<32x128xf32>, i32 -> vector<32x128xf32>
      %70 = arith.select %17, %68, %69 : vector<32x128xi1>, vector<32x128xf32>
      %71 = arith.subf %70, %48 : vector<32x128xf32>
      %cst_45 = arith.constant 1.000000e+00 : f32
      %72 = vector.broadcast %cst_45 : f32 to vector<32x128xf32>
      %73 = arith.addf %71, %72 : vector<32x128xf32>
      %c127_i32_46 = arith.constant 127 : i32
      %74 = tpu.dynamic_rotate %73 by %c127_i32_46 dim 1 : vector<32x128xf32>, i32 -> vector<32x128xf32>
      %c1_i32_47 = arith.constant 1 : i32
      %75 = tpu.dynamic_rotate %73 by %c1_i32_47 dim 1 : vector<32x128xf32>, i32 -> vector<32x128xf32>
      %76 = arith.select %17, %74, %75 : vector<32x128xi1>, vector<32x128xf32>
      %77 = arith.mulf %73, %76 : vector<32x128xf32>
      %c126_i32_48 = arith.constant 126 : i32
      %78 = tpu.dynamic_rotate %50 by %c126_i32_48 dim 1 : vector<32x128xf32>, i32 -> vector<32x128xf32>
      %c2_i32_49 = arith.constant 2 : i32
      %79 = tpu.dynamic_rotate %50 by %c2_i32_49 dim 1 : vector<32x128xf32>, i32 -> vector<32x128xf32>
      %80 = arith.select %17, %78, %79 : vector<32x128xi1>, vector<32x128xf32>
      %81 = arith.subf %80, %50 : vector<32x128xf32>
      %cst_50 = arith.constant 1.000000e+00 : f32
      %82 = vector.broadcast %cst_50 : f32 to vector<32x128xf32>
      %83 = arith.addf %81, %82 : vector<32x128xf32>
      %c127_i32_51 = arith.constant 127 : i32
      %84 = tpu.dynamic_rotate %83 by %c127_i32_51 dim 1 : vector<32x128xf32>, i32 -> vector<32x128xf32>
      %c1_i32_52 = arith.constant 1 : i32
      %85 = tpu.dynamic_rotate %83 by %c1_i32_52 dim 1 : vector<32x128xf32>, i32 -> vector<32x128xf32>
      %86 = arith.select %17, %84, %85 : vector<32x128xi1>, vector<32x128xf32>
      %87 = arith.mulf %83, %86 : vector<32x128xf32>
      %88 = arith.addf %77, %87 : vector<32x128xf32>
      %89 = arith.subf %88, %67 : vector<32x128xf32>
      %90 = arith.divf %67, %89 : vector<32x128xf32>
      %cst_53 = arith.constant 1.000000e-03 : f32
      %91 = vector.broadcast %cst_53 : f32 to vector<32x128xf32>
      %92 = arith.maximumf %90, %91 : vector<32x128xf32>
      %93 = math.log %92 : vector<32x128xf32>
      %cst_54 = arith.constant 0.000000e+00 : f32
      %94 = vector.broadcast %cst_54 : f32 to vector<32x128xf32>
      %95 = arith.subf %94, %93 : vector<32x128xf32>
      %cst_55 = arith.constant 0.000000e+00 : f32
      %96 = vector.broadcast %cst_55 : f32 to vector<32x128xf32>
      %97 = arith.cmpf ogt, %52, %96 : vector<32x128xf32>
      %98 = arith.andi %9, %97 : vector<32x128xi1>
      %cst_56 = arith.constant 0.000000e+00 : f32
      %99 = vector.broadcast %cst_56 : f32 to vector<32x128xf32>
      %100 = arith.select %98, %95, %99 : vector<32x128xi1>, vector<32x128xf32>
      %101 = vector.extract_strided_slice %100 {offsets = [0, 0], sizes = [8, 128], strides = [1, 1]} : vector<32x128xf32> to vector<8x128xf32>
      %102 = vector.extract_strided_slice %100 {offsets = [8, 0], sizes = [8, 128], strides = [1, 1]} : vector<32x128xf32> to vector<8x128xf32>
      %103 = arith.addf %101, %102 : vector<8x128xf32>
      %104 = vector.extract_strided_slice %100 {offsets = [16, 0], sizes = [8, 128], strides = [1, 1]} : vector<32x128xf32> to vector<8x128xf32>
      %105 = arith.addf %103, %104 : vector<8x128xf32>
      %106 = vector.extract_strided_slice %100 {offsets = [24, 0], sizes = [8, 128], strides = [1, 1]} : vector<32x128xf32> to vector<8x128xf32>
      %107 = arith.addf %105, %106 : vector<8x128xf32>
      %108 = arith.addf %arg7, %107 : vector<8x128xf32>
      %109 = arith.mulf %48, %52 : vector<32x128xf32>
      %110 = vector.extract_strided_slice %109 {offsets = [0, 0], sizes = [8, 128], strides = [1, 1]} : vector<32x128xf32> to vector<8x128xf32>
      %111 = vector.extract_strided_slice %109 {offsets = [8, 0], sizes = [8, 128], strides = [1, 1]} : vector<32x128xf32> to vector<8x128xf32>
      %112 = arith.addf %110, %111 : vector<8x128xf32>
      %113 = vector.extract_strided_slice %109 {offsets = [16, 0], sizes = [8, 128], strides = [1, 1]} : vector<32x128xf32> to vector<8x128xf32>
      %114 = arith.addf %112, %113 : vector<8x128xf32>
      %115 = vector.extract_strided_slice %109 {offsets = [24, 0], sizes = [8, 128], strides = [1, 1]} : vector<32x128xf32> to vector<8x128xf32>
      %116 = arith.addf %114, %115 : vector<8x128xf32>
      %117 = arith.addf %arg8, %116 : vector<8x128xf32>
      %cst_57 = arith.constant 1.000000e+00 : f32
      %cst_58 = arith.constant 0.000000e+00 : f32
      %118 = vector.broadcast %cst_57 : f32 to vector<32x128xf32>
      %119 = vector.broadcast %cst_58 : f32 to vector<32x128xf32>
      %120 = arith.select %98, %118, %119 : vector<32x128xi1>, vector<32x128xf32>
      %121 = vector.extract_strided_slice %120 {offsets = [0, 0], sizes = [8, 128], strides = [1, 1]} : vector<32x128xf32> to vector<8x128xf32>
      %122 = vector.extract_strided_slice %120 {offsets = [8, 0], sizes = [8, 128], strides = [1, 1]} : vector<32x128xf32> to vector<8x128xf32>
      %123 = arith.addf %121, %122 : vector<8x128xf32>
      %124 = vector.extract_strided_slice %120 {offsets = [16, 0], sizes = [8, 128], strides = [1, 1]} : vector<32x128xf32> to vector<8x128xf32>
      %125 = arith.addf %123, %124 : vector<8x128xf32>
      %126 = vector.extract_strided_slice %120 {offsets = [24, 0], sizes = [8, 128], strides = [1, 1]} : vector<32x128xf32> to vector<8x128xf32>
      %127 = arith.addf %125, %126 : vector<8x128xf32>
      %128 = arith.addf %arg9, %127 : vector<8x128xf32>
      %cst_59 = arith.constant 0.000000e+00 : f32
      %129 = vector.broadcast %cst_59 : f32 to vector<32x128xf32>
      %130 = arith.cmpf ogt, %52, %129 : vector<32x128xf32>
      %cst_60 = arith.constant 1.000000e+00 : f32
      %cst_61 = arith.constant 0.000000e+00 : f32
      %131 = vector.broadcast %cst_60 : f32 to vector<32x128xf32>
      %132 = vector.broadcast %cst_61 : f32 to vector<32x128xf32>
      %133 = arith.select %130, %131, %132 : vector<32x128xi1>, vector<32x128xf32>
      %134 = vector.extract_strided_slice %133 {offsets = [0, 0], sizes = [8, 128], strides = [1, 1]} : vector<32x128xf32> to vector<8x128xf32>
      %135 = vector.extract_strided_slice %133 {offsets = [8, 0], sizes = [8, 128], strides = [1, 1]} : vector<32x128xf32> to vector<8x128xf32>
      %136 = arith.addf %134, %135 : vector<8x128xf32>
      %137 = vector.extract_strided_slice %133 {offsets = [16, 0], sizes = [8, 128], strides = [1, 1]} : vector<32x128xf32> to vector<8x128xf32>
      %138 = arith.addf %136, %137 : vector<8x128xf32>
      %139 = vector.extract_strided_slice %133 {offsets = [24, 0], sizes = [8, 128], strides = [1, 1]} : vector<32x128xf32> to vector<8x128xf32>
      %140 = arith.addf %138, %139 : vector<8x128xf32>
      %141 = arith.addf %arg10, %140 : vector<8x128xf32>
      scf.yield %108, %117, %128, %141 : vector<8x128xf32>, vector<8x128xf32>, vector<8x128xf32>, vector<8x128xf32>
    }
    %c3_i32_5 = arith.constant 3 : i32
    %c0 = arith.constant 0 : index
    %c0_6 = arith.constant 0 : index
    %c0_7 = arith.constant 0 : index
    %c0_8 = arith.constant 0 : index
    %21 = vector.load %arg5[%c0, %c0_6, %c0_7, %c0_8] : memref<1x4x8x128xf32, #tpu.memory_space<vmem>>, vector<1x1x8x128xf32>
    %22 = vector.shape_cast %21 : vector<1x1x8x128xf32> to vector<8x128xf32>
    %23 = arith.addf %22, %20#0 : vector<8x128xf32>
    %c0_9 = arith.constant 0 : index
    %c0_10 = arith.constant 0 : index
    %c0_11 = arith.constant 0 : index
    %c0_12 = arith.constant 0 : index
    %24 = vector.load %arg5[%c0_9, %c0_10, %c0_11, %c0_12] : memref<1x4x8x128xf32, #tpu.memory_space<vmem>>, vector<1x1x8x128xf32>
    %25 = vector.shape_cast %24 : vector<1x1x8x128xf32> to vector<8x128xf32>
    %26 = vector.shape_cast %23 : vector<8x128xf32> to vector<1x1x8x128xf32>
    tpu.vector_store %arg5[%c0_9, %c0_10, %c0_11, %c0_12], %26 {strides = array<i32>} : memref<1x4x8x128xf32, #tpu.memory_space<vmem>>, vector<1x1x8x128xf32>,
    %c0_13 = arith.constant 0 : index
    %c1 = arith.constant 1 : index
    %c0_14 = arith.constant 0 : index
    %c0_15 = arith.constant 0 : index
    %27 = vector.load %arg5[%c0_13, %c1, %c0_14, %c0_15] : memref<1x4x8x128xf32, #tpu.memory_space<vmem>>, vector<1x1x8x128xf32>
    %28 = vector.shape_cast %27 : vector<1x1x8x128xf32> to vector<8x128xf32>
    %29 = arith.addf %28, %20#1 : vector<8x128xf32>
    %c0_16 = arith.constant 0 : index
    %c1_17 = arith.constant 1 : index
    %c0_18 = arith.constant 0 : index
    %c0_19 = arith.constant 0 : index
    %30 = vector.load %arg5[%c0_16, %c1_17, %c0_18, %c0_19] : memref<1x4x8x128xf32, #tpu.memory_space<vmem>>, vector<1x1x8x128xf32>
    %31 = vector.shape_cast %30 : vector<1x1x8x128xf32> to vector<8x128xf32>
    %32 = vector.shape_cast %29 : vector<8x128xf32> to vector<1x1x8x128xf32>
    tpu.vector_store %arg5[%c0_16, %c1_17, %c0_18, %c0_19], %32 {strides = array<i32>} : memref<1x4x8x128xf32, #tpu.memory_space<vmem>>, vector<1x1x8x128xf32>,
    %c0_20 = arith.constant 0 : index
    %c2 = arith.constant 2 : index
    %c0_21 = arith.constant 0 : index
    %c0_22 = arith.constant 0 : index
    %33 = vector.load %arg5[%c0_20, %c2, %c0_21, %c0_22] : memref<1x4x8x128xf32, #tpu.memory_space<vmem>>, vector<1x1x8x128xf32>
    %34 = vector.shape_cast %33 : vector<1x1x8x128xf32> to vector<8x128xf32>
    %35 = arith.addf %34, %20#2 : vector<8x128xf32>
    %c0_23 = arith.constant 0 : index
    %c2_24 = arith.constant 2 : index
    %c0_25 = arith.constant 0 : index
    %c0_26 = arith.constant 0 : index
    %36 = vector.load %arg5[%c0_23, %c2_24, %c0_25, %c0_26] : memref<1x4x8x128xf32, #tpu.memory_space<vmem>>, vector<1x1x8x128xf32>
    %37 = vector.shape_cast %36 : vector<1x1x8x128xf32> to vector<8x128xf32>
    %38 = vector.shape_cast %35 : vector<8x128xf32> to vector<1x1x8x128xf32>
    tpu.vector_store %arg5[%c0_23, %c2_24, %c0_25, %c0_26], %38 {strides = array<i32>} : memref<1x4x8x128xf32, #tpu.memory_space<vmem>>, vector<1x1x8x128xf32>,
    %c0_27 = arith.constant 0 : index
    %c3 = arith.constant 3 : index
    %c0_28 = arith.constant 0 : index
    %c0_29 = arith.constant 0 : index
    %39 = vector.load %arg5[%c0_27, %c3, %c0_28, %c0_29] : memref<1x4x8x128xf32, #tpu.memory_space<vmem>>, vector<1x1x8x128xf32>
    %40 = vector.shape_cast %39 : vector<1x1x8x128xf32> to vector<8x128xf32>
    %41 = arith.addf %40, %20#3 : vector<8x128xf32>
    %c0_30 = arith.constant 0 : index
    %c3_31 = arith.constant 3 : index
    %c0_32 = arith.constant 0 : index
    %c0_33 = arith.constant 0 : index
    %42 = vector.load %arg5[%c0_30, %c3_31, %c0_32, %c0_33] : memref<1x4x8x128xf32, #tpu.memory_space<vmem>>, vector<1x1x8x128xf32>
    %43 = vector.shape_cast %42 : vector<1x1x8x128xf32> to vector<8x128xf32>
    %44 = vector.shape_cast %41 : vector<8x128xf32> to vector<1x1x8x128xf32>
    tpu.vector_store %arg5[%c0_30, %c3_31, %c0_32, %c0_33], %44 {strides = array<i32>} : memref<1x4x8x128xf32, #tpu.memory_space<vmem>>, vector<1x1x8x128xf32>,
    return
  }
  func.func @transform_0(%arg0: i32, %arg1: i32) -> (i32, i32) {
    %c1_i32 = arith.constant 1 : i32
    %0 = arith.muli %arg0, %c1_i32 : i32
    %1 = arith.addi %0, %arg1 : i32
    %c0_i32 = arith.constant 0 : i32
    %c0_i32_0 = arith.constant 0 : i32
    return %1, %c0_i32 : i32, i32
  }
  func.func @transform_1(%arg0: i32, %arg1: i32) -> (i32, i32) {
    %c1_i32 = arith.constant 1 : i32
    %0 = arith.muli %arg0, %c1_i32 : i32
    %1 = arith.addi %0, %arg1 : i32
    %c0_i32 = arith.constant 0 : i32
    %c0_i32_0 = arith.constant 0 : i32
    return %1, %c0_i32 : i32, i32
  }
  func.func @transform_2(%arg0: i32, %arg1: i32) -> (i32, i32) {
    %c1_i32 = arith.constant 1 : i32
    %0 = arith.muli %arg0, %c1_i32 : i32
    %1 = arith.addi %0, %arg1 : i32
    %c0_i32 = arith.constant 0 : i32
    %c0_i32_0 = arith.constant 0 : i32
    return %1, %c0_i32 : i32, i32
  }
  func.func @transform_3(%arg0: i32, %arg1: i32) -> (i32, i32, i32, i32) {
    %c0_i32 = arith.constant 0 : i32
    %c0_i32_0 = arith.constant 0 : i32
    %c0_i32_1 = arith.constant 0 : i32
    %c0_i32_2 = arith.constant 0 : i32
    return %arg0, %c0_i32, %c0_i32_0, %c0_i32_1 : i32, i32, i32, i32
  }
}

</mosaic_0001>

<llo_original>
// kernel: tpu_custom_call.1
$region0: #{tpu_custom_call.1}
  #allocation0 [shape = 'u32[]', space=smem, size = 0x4, offset = 0x4, fixed_abs, tag = 'smem constant byte address 0x4 - core index']
  #allocation1 [shape = 'u32[144,128]{1,0:T(1,128)}', space=vmem, size = 0x12000, scoped, tag = 'internal scratch']
  %s0 = inlined_call_operand.hbm [shape: f32[96,128], index: 0, kind: input, shape index: {}]
  %s1 = inlined_call_operand.hbm [shape: f32[96,128], index: 1, kind: input, shape index: {}]
  %s2 = inlined_call_operand.hbm [shape: f32[96,128], index: 2, kind: input, shape index: {}]
  %s3 = inlined_call_operand.hbm [shape: f32[1,4,8,128], index: 3, kind: output, shape index: {}]
  %s4 = sld [smem:[#allocation0]]
  $region45: #{tpu_custom_call.1} parent=0
    _
  %s6 = ssub.s32 1, %s4
  %s7 = scalar_select 0, %s6, %s4
  $region1: #{tpu_custom_call.1} parent=0
    #allocation2 [shape = 'u8[49152]{0}', space=vmem, size = 0xc000, scoped, tag = 'input window, operand 0, single buffered']
    #allocation3 [shape = 's32[1]{0}', space=sflag, size = 0x4, scoped, tag = 'scoped memory for tpu_custom_call.1']
    #allocation4 [shape = 's32[1]{0}', space=sflag, size = 0x4, scoped, tag = 'scoped memory for tpu_custom_call.1']
    #allocation5 [shape = 'u8[49152]{0}', space=vmem, size = 0xc000, scoped, tag = 'input window, operand 1, single buffered']
    #allocation6 [shape = 's32[1]{0}', space=sflag, size = 0x4, scoped, tag = 'scoped memory for tpu_custom_call.1']
    #allocation7 [shape = 'u8[49152]{0}', space=vmem, size = 0xc000, scoped, tag = 'input window, operand 2, single buffered']
    #allocation8 [shape = 'u8[16384]{0}', space=vmem, size = 0x4000, scoped, tag = 'output window, operand 0, single buffered']
    %8 = vsyncpa [#allocation3], 0
    %9 = vsyncpa [#allocation6], 0
    %10 = vsyncpa [#allocation4], 0
    // Predicated region
    $region2: #{tpu_custom_call.1} parent=1 // pred_check
      _
    $region3: #{tpu_custom_call.1} parent=1 // pred_check_branch
      %12 = sbr.rel (0) target = $region5
    $region4: #{tpu_custom_call.1} parent=1 // pred_region
      %s13 = sadd.s32 0, 0
      %s14 = smul.u32 12, %s13
      %s16 = ssub.s32 1536, 1536
      %17 = vsyncadd [#allocation3], %s16
      %s18 = smul.addr %s14, 128
      %s19 = scalar_lea.hbm %s0, %s18
      %s20 = sshll.u32 [#allocation2], 4
      %s21 = int_to_ptr.vmem [resolvable:$true] %s20
      %26 = dma.hbm_to_vmem [thread:$0]  %s19, 1536, %s21, [#allocation3], 128, 128, 8
    $region5: #{tpu_custom_call.1} parent=1 // pred_fallthru
      _
    // Predicated region
    $region6: #{tpu_custom_call.1} parent=1 // pred_check
      _
    $region7: #{tpu_custom_call.1} parent=1 // pred_check_branch
      %28 = sbr.rel (0) target = $region9
    $region8: #{tpu_custom_call.1} parent=1 // pred_region
      %s29 = sadd.s32 0, 0
      %s30 = smul.u32 12, %s29
      %s32 = ssub.s32 1536, 1536
      %33 = vsyncadd [#allocation6], %s32
      %s34 = smul.addr %s30, 128
      %s35 = scalar_lea.hbm %s1, %s34
      %s36 = sshll.u32 [#allocation5], 4
      %s37 = int_to_ptr.vmem [resolvable:$true] %s36
      %42 = dma.hbm_to_vmem [thread:$0]  %s35, 1536, %s37, [#allocation6], 128, 128, 8
    $region9: #{tpu_custom_call.1} parent=1 // pred_fallthru
      _
    // Predicated region
    $region10: #{tpu_custom_call.1} parent=1 // pred_check
      _
    $region11: #{tpu_custom_call.1} parent=1 // pred_check_branch
      %44 = sbr.rel (0) target = $region13
    $region12: #{tpu_custom_call.1} parent=1 // pred_region
      %s45 = sadd.s32 0, 0
      %s46 = smul.u32 12, %s45
      %s48 = ssub.s32 1536, 1536
      %49 = vsyncadd [#allocation6], %s48
      %s50 = smul.addr %s46, 128
      %s51 = scalar_lea.hbm %s2, %s50
      %s52 = sshll.u32 [#allocation7], 4
      %s53 = int_to_ptr.vmem [resolvable:$true] %s52
      %58 = dma.hbm_to_vmem [thread:$0]  %s51, 1536, %s53, [#allocation6], 128, 128, 8
    $region13: #{tpu_custom_call.1} parent=1 // pred_fallthru
      _
    // Predicated region
    $region14: #{tpu_custom_call.1} parent=1 // pred_check
      _
    $region15: #{tpu_custom_call.1} parent=1 // pred_check_branch
      %60 = sbr.rel (0) target = $region17
    $region16: #{tpu_custom_call.1} parent=1 // pred_region
      %61 = dma.done [#allocation3], 1536
    $region17: #{tpu_custom_call.1} parent=1 // pred_fallthru
      _
    // Predicated region
    $region18: #{tpu_custom_call.1} parent=1 // pred_check
      _
    $region19: #{tpu_custom_call.1} parent=1 // pred_check_branch
      %63 = sbr.rel (0) target = $region21
    $region20: #{tpu_custom_call.1} parent=1 // pred_region
      %64 = dma.done [#allocation6], 1536
    $region21: #{tpu_custom_call.1} parent=1 // pred_fallthru
      _
    // Predicated region
    $region22: #{tpu_custom_call.1} parent=1 // pred_check
      _
    $region23: #{tpu_custom_call.1} parent=1 // pred_check_branch
      %66 = sbr.rel (0) target = $region25
    $region24: #{tpu_custom_call.1} parent=1 // pred_region
      %67 = dma.done [#allocation6], 1536
    $region25: #{tpu_custom_call.1} parent=1 // pred_fallthru
      _
    %s68 = sadd.s32 0, 0
    %s69 = smul.u32 12, %s68
    %s70 = sadd.s32 0, 0
    %s71 = smul.u32 12, %s70
    %s72 = sadd.s32 0, 0
    %s73 = smul.u32 12, %s72
    %p74 = scmp.eq.s32.totalorder 0, 0
    // Predicated region
    $region26: #{tpu_custom_call.1} parent=1 // pred_check
      %p75 = pneg %p74
    $region27: #{tpu_custom_call.1} parent=1 // pred_check_branch
      %77 = sbr.rel (%p75) target = $region29
    $region28: #{tpu_custom_call.1} parent=1 // pred_region
      %78 = vst [vmem:[#allocation8] sm:$0xff] 0.0
      %79 = vst [vmem:[#allocation8 + $0x8] sm:$0xff] 0.0
      %80 = vst [vmem:[#allocation8 + $0x10] sm:$0xff] 0.0
      %81 = vst [vmem:[#allocation8 + $0x18] sm:$0xff] 0.0
    $region29: #{tpu_custom_call.1} parent=1 // pred_fallthru
      _
    %v82 = vlaneseq
    %v83 = vand.u32 %v82, 127
    %v84 = vand.u32 %v83, 3
    %vm85 = vcmp.lt.s32.totalorder %v84, 2
    %vm86 = vcmp.eq.s32.totalorder %v84, 0
    %v87 = vadd.s32 %v83, 2
    %v88 = vand.u32 %v87, 127
    %v89 = vcvt.s32.f32 %v88
    %v90 = vcvt.s32.f32 %v83
    %91 = vrot.lane.b32.xlu0 %v90, 126
    %v92 = vpop.permute.xlu0 %91
    %vm93 = vcmp.eq.f32.partialorder %v92, %v89
    loop: start=0, step=1, limit=3
    $region30: #{tpu_custom_call.1} parent=1 // loop_pre_header
      _
    $region31: #{tpu_custom_call.1} parent=1 // loop_header
      %s95 = sphi 0, %s99
      %p96 = scmp.ge.s32.totalorder %s95, 3
      %v100 = vphi 0.0, %v339
      %v101 = vphi 0.0, %v347
      %v102 = vphi 0.0, %v355
      %v103 = vphi 0.0, %v363
    $region32: #{tpu_custom_call.1} parent=1 // loop_header_branch
      %98 = sbr.rel (%p96) target = $region36
    $region33: #{tpu_custom_call.1} parent=1 // loop_body
      %s104 = smul.u32 %s95, 32
      %s105 = scalar_lea.vmem [#allocation2], %s104
      %v106 = vld [vmem:[%s105] sm:$0xff]
      %v107 = vld [vmem:[%s105 + $0x8] sm:$0xff]
      %v108 = vld [vmem:[%s105 + $0x10] sm:$0xff]
      %v109 = vld [vmem:[%s105 + $0x18] sm:$0xff]
      %s110 = scalar_lea.vmem [#allocation5], %s104
      %v111 = vld [vmem:[%s110] sm:$0xff]
      %v112 = vld [vmem:[%s110 + $0x8] sm:$0xff]
      %v113 = vld [vmem:[%s110 + $0x10] sm:$0xff]
      %v114 = vld [vmem:[%s110 + $0x18] sm:$0xff]
      %s115 = scalar_lea.vmem [#allocation7], %s104
      %v116 = vld [vmem:[%s115] sm:$0xff]
      %v117 = vld [vmem:[%s115 + $0x8] sm:$0xff]
      %v118 = vld [vmem:[%s115 + $0x10] sm:$0xff]
      %v119 = vld [vmem:[%s115 + $0x18] sm:$0xff]
      %v120 = vmax.f32 %v106, %v111
      %v121 = vmax.f32 %v107, %v112
      %v122 = vmax.f32 %v108, %v113
      %v123 = vmax.f32 %v109, %v114
      %v124 = vmin.f32 %v106, %v111
      %v125 = vmin.f32 %v107, %v112
      %v126 = vmin.f32 %v108, %v113
      %v127 = vmin.f32 %v109, %v114
      %v128 = vsel %vm85, %v120, %v124
      %v129 = vsel %vm85, %v121, %v125
      %v130 = vsel %vm85, %v122, %v126
      %v131 = vsel %vm85, %v123, %v127
      %132 = vrot.lane.b32.xlu0 %v128, 126
      %v133 = vpop.permute.xlu0 %132
      %134 = vrot.lane.b32.xlu0 %v129, 126
      %v135 = vpop.permute.xlu0 %134
      %136 = vrot.lane.b32.xlu0 %v130, 126
      %v137 = vpop.permute.xlu0 %136
      %138 = vrot.lane.b32.xlu0 %v131, 126
      %v139 = vpop.permute.xlu0 %138
      %140 = vrot.lane.b32.xlu0 %v128, 2
      %v141 = vpop.permute.xlu0 %140
      %142 = vrot.lane.b32.xlu0 %v129, 2
      %v143 = vpop.permute.xlu0 %142
      %144 = vrot.lane.b32.xlu0 %v130, 2
      %v145 = vpop.permute.xlu0 %144
      %146 = vrot.lane.b32.xlu0 %v131, 2
      %v147 = vpop.permute.xlu0 %146
      %v148 = vsel %vm93, %v133, %v141
      %v149 = vsel %vm93, %v135, %v143
      %v150 = vsel %vm93, %v137, %v145
      %v151 = vsel %vm93, %v139, %v147
      %v152 = vsub.f32 %v148, %v128
      %v153 = vsub.f32 %v149, %v129
      %v154 = vsub.f32 %v150, %v130
      %v155 = vsub.f32 %v151, %v131
      %v156 = vadd.f32 %v152, 1.0
      %v157 = vadd.f32 %v153, 1.0
      %v158 = vadd.f32 %v154, 1.0
      %v159 = vadd.f32 %v155, 1.0
      %v160 = vmax.f32 %v156, 0.0
      %v161 = vmax.f32 %v157, 0.0
      %v162 = vmax.f32 %v158, 0.0
      %v163 = vmax.f32 %v159, 0.0
      %164 = vrot.lane.b32.xlu0 %v160, 127
      %v165 = vpop.permute.xlu0 %164
      %166 = vrot.lane.b32.xlu0 %v161, 127
      %v167 = vpop.permute.xlu0 %166
      %168 = vrot.lane.b32.xlu0 %v162, 127
      %v169 = vpop.permute.xlu0 %168
      %170 = vrot.lane.b32.xlu0 %v163, 127
      %v171 = vpop.permute.xlu0 %170
      %172 = vrot.lane.b32.xlu0 %v160, 1
      %v173 = vpop.permute.xlu0 %172
      %174 = vrot.lane.b32.xlu0 %v161, 1
      %v175 = vpop.permute.xlu0 %174
      %176 = vrot.lane.b32.xlu0 %v162, 1
      %v177 = vpop.permute.xlu0 %176
      %178 = vrot.lane.b32.xlu0 %v163, 1
      %v179 = vpop.permute.xlu0 %178
      %v180 = vsel %vm93, %v165, %v173
      %v181 = vsel %vm93, %v167, %v175
      %v182 = vsel %vm93, %v169, %v177
      %v183 = vsel %vm93, %v171, %v179
      %v184 = vmul.f32 %v160, %v180
      %v185 = vmul.f32 %v161, %v181
      %v186 = vmul.f32 %v162, %v182
      %v187 = vmul.f32 %v163, %v183
      %188 = vrot.lane.b32.xlu0 %v106, 126
      %v189 = vpop.permute.xlu0 %188
      %190 = vrot.lane.b32.xlu0 %v107, 126
      %v191 = vpop.permute.xlu0 %190
      %192 = vrot.lane.b32.xlu0 %v108, 126
      %v193 = vpop.permute.xlu0 %192
      %194 = vrot.lane.b32.xlu0 %v109, 126
      %v195 = vpop.permute.xlu0 %194
      %196 = vrot.lane.b32.xlu0 %v106, 2
      %v197 = vpop.permute.xlu0 %196
      %198 = vrot.lane.b32.xlu0 %v107, 2
      %v199 = vpop.permute.xlu0 %198
      %200 = vrot.lane.b32.xlu0 %v108, 2
      %v201 = vpop.permute.xlu0 %200
      %202 = vrot.lane.b32.xlu0 %v109, 2
      %v203 = vpop.permute.xlu0 %202
      %v204 = vsel %vm93, %v189, %v197
      %v205 = vsel %vm93, %v191, %v199
      %v206 = vsel %vm93, %v193, %v201
      %v207 = vsel %vm93, %v195, %v203
      %v208 = vsub.f32 %v204, %v106
      %v209 = vsub.f32 %v205, %v107
      %v210 = vsub.f32 %v206, %v108
      %v211 = vsub.f32 %v207, %v109
      %v212 = vadd.f32 %v208, 1.0
      %v213 = vadd.f32 %v209, 1.0
      %v214 = vadd.f32 %v210, 1.0
      %v215 = vadd.f32 %v211, 1.0
      %216 = vrot.lane.b32.xlu0 %v212, 127
      %v217 = vpop.permute.xlu0 %216
      %218 = vrot.lane.b32.xlu0 %v213, 127
      %v219 = vpop.permute.xlu0 %218
      %220 = vrot.lane.b32.xlu0 %v214, 127
      %v221 = vpop.permute.xlu0 %220
      %222 = vrot.lane.b32.xlu0 %v215, 127
      %v223 = vpop.permute.xlu0 %222
      %224 = vrot.lane.b32.xlu0 %v212, 1
      %v225 = vpop.permute.xlu0 %224
      %226 = vrot.lane.b32.xlu0 %v213, 1
      %v227 = vpop.permute.xlu0 %226
      %228 = vrot.lane.b32.xlu0 %v214, 1
      %v229 = vpop.permute.xlu0 %228
      %230 = vrot.lane.b32.xlu0 %v215, 1
      %v231 = vpop.permute.xlu0 %230
      %v232 = vsel %vm93, %v217, %v225
      %v233 = vsel %vm93, %v219, %v227
      %v234 = vsel %vm93, %v221, %v229
      %v235 = vsel %vm93, %v223, %v231
      %v236 = vmul.f32 %v212, %v232
      %v237 = vmul.f32 %v213, %v233
      %v238 = vmul.f32 %v214, %v234
      %v239 = vmul.f32 %v215, %v235
      %240 = vrot.lane.b32.xlu0 %v111, 126
      %v241 = vpop.permute.xlu0 %240
      %242 = vrot.lane.b32.xlu0 %v112, 126
      %v243 = vpop.permute.xlu0 %242
      %244 = vrot.lane.b32.xlu0 %v113, 126
      %v245 = vpop.permute.xlu0 %244
      %246 = vrot.lane.b32.xlu0 %v114, 126
      %v247 = vpop.permute.xlu0 %246
      %248 = vrot.lane.b32.xlu0 %v111, 2
      %v249 = vpop.permute.xlu0 %248
      %250 = vrot.lane.b32.xlu0 %v112, 2
      %v251 = vpop.permute.xlu0 %250
      %252 = vrot.lane.b32.xlu0 %v113, 2
      %v253 = vpop.permute.xlu0 %252
      %254 = vrot.lane.b32.xlu0 %v114, 2
      %v255 = vpop.permute.xlu0 %254
      %v256 = vsel %vm93, %v241, %v249
      %v257 = vsel %vm93, %v243, %v251
      %v258 = vsel %vm93, %v245, %v253
      %v259 = vsel %vm93, %v247, %v255
      %v260 = vsub.f32 %v256, %v111
      %v261 = vsub.f32 %v257, %v112
      %v262 = vsub.f32 %v258, %v113
      %v263 = vsub.f32 %v259, %v114
      %v264 = vadd.f32 %v260, 1.0
      %v265 = vadd.f32 %v261, 1.0
      %v266 = vadd.f32 %v262, 1.0
      %v267 = vadd.f32 %v263, 1.0
      %268 = vrot.lane.b32.xlu0 %v264, 127
      %v269 = vpop.permute.xlu0 %268
      %270 = vrot.lane.b32.xlu0 %v265, 127
      %v271 = vpop.permute.xlu0 %270
      %272 = vrot.lane.b32.xlu0 %v266, 127
      %v273 = vpop.permute.xlu0 %272
      %274 = vrot.lane.b32.xlu0 %v267, 127
      %v275 = vpop.permute.xlu0 %274
      %276 = vrot.lane.b32.xlu0 %v264, 1
      %v277 = vpop.permute.xlu0 %276
      %278 = vrot.lane.b32.xlu0 %v265, 1
      %v279 = vpop.permute.xlu0 %278
      %280 = vrot.lane.b32.xlu0 %v266, 1
      %v281 = vpop.permute.xlu0 %280
      %282 = vrot.lane.b32.xlu0 %v267, 1
      %v283 = vpop.permute.xlu0 %282
      %v284 = vsel %vm93, %v269, %v277
      %v285 = vsel %vm93, %v271, %v279
      %v286 = vsel %vm93, %v273, %v281
      %v287 = vsel %vm93, %v275, %v283
      %v288 = vmul.f32 %v264, %v284
      %v289 = vmul.f32 %v265, %v285
      %v290 = vmul.f32 %v266, %v286
      %v291 = vmul.f32 %v267, %v287
      %v292 = vadd.f32 %v236, %v288
      %v293 = vadd.f32 %v237, %v289
      %v294 = vadd.f32 %v238, %v290
      %v295 = vadd.f32 %v239, %v291
      %v296 = vsub.f32 %v292, %v184
      %v297 = vsub.f32 %v293, %v185
      %v298 = vsub.f32 %v294, %v186
      %v299 = vsub.f32 %v295, %v187
      %v300 = vrcp.pop %v296
      %v301 = vmul.f32 %v184, %v300
      %v302 = vrcp.pop %v297
      %v303 = vmul.f32 %v185, %v302
      %v304 = vrcp.pop %v298
      %v305 = vmul.f32 %v186, %v304
      %v306 = vrcp.pop %v299
      %v307 = vmul.f32 %v187, %v306
      %v308 = vmax.f32 %v301, 0.001
      %v309 = vmax.f32 %v303, 0.001
      %v310 = vmax.f32 %v305, 0.001
      %v311 = vmax.f32 %v307, 0.001
      %v312 = vlog2.pop %v308
      %v313 = vmul.f32 %v312, 0.6931472
      %v314 = vlog2.pop %v309
      %v315 = vmul.f32 %v314, 0.6931472
      %v316 = vlog2.pop %v310
      %v317 = vmul.f32 %v316, 0.6931472
      %v318 = vlog2.pop %v311
      %v319 = vmul.f32 %v318, 0.6931472
      %v320 = vsub.f32 0.0, %v313
      %v321 = vsub.f32 0.0, %v315
      %v322 = vsub.f32 0.0, %v317
      %v323 = vsub.f32 0.0, %v319
      %vm324 = vcmp.gt.f32.partialorder %v116, 0.0
      %vm325 = vcmp.gt.f32.partialorder %v117, 0.0
      %vm326 = vcmp.gt.f32.partialorder %v118, 0.0
      %vm327 = vcmp.gt.f32.partialorder %v119, 0.0
      %vm328 = vmand %vm86, %vm324
      %vm329 = vmand %vm86, %vm325
      %vm330 = vmand %vm86, %vm326
      %vm331 = vmand %vm86, %vm327
      %v332 = vsel %vm328, %v320, 0.0
      %v333 = vsel %vm329, %v321, 0.0
      %v334 = vsel %vm330, %v322, 0.0
      %v335 = vsel %vm331, %v323, 0.0
      %v336 = vadd.f32 %v332, %v333
      %v337 = vadd.f32 %v336, %v334
      %v338 = vadd.f32 %v337, %v335
      %v339 = vadd.f32 %v100, %v338
      %v340 = vmul.f32 %v106, %v116
      %v341 = vmul.f32 %v107, %v117
      %v342 = vmul.f32 %v108, %v118
      %v343 = vmul.f32 %v109, %v119
      %v344 = vadd.f32 %v340, %v341
      %v345 = vadd.f32 %v344, %v342
      %v346 = vadd.f32 %v345, %v343
      %v347 = vadd.f32 %v101, %v346
      %v348 = vsel %vm328, 1.0, 0.0
      %v349 = vsel %vm329, 1.0, 0.0
      %v350 = vsel %vm330, 1.0, 0.0
      %v351 = vsel %vm331, 1.0, 0.0
      %v352 = vadd.f32 %v348, %v349
      %v353 = vadd.f32 %v352, %v350
      %v354 = vadd.f32 %v353, %v351
      %v355 = vadd.f32 %v102, %v354
      %v356 = vsel %vm324, 1.0, 0.0
      %v357 = vsel %vm325, 1.0, 0.0
      %v358 = vsel %vm326, 1.0, 0.0
      %v359 = vsel %vm327, 1.0, 0.0
      %v360 = vadd.f32 %v356, %v357
      %v361 = vadd.f32 %v360, %v358
      %v362 = vadd.f32 %v361, %v359
      %v363 = vadd.f32 %v103, %v362
    $region34: #{tpu_custom_call.1} parent=1 // loop_footer
      %s99 = sadd.s32 1, %s95
    $region35: #{tpu_custom_call.1} parent=1 // loop_footer_branch
      %94 = sbr.rel target = $region31
    $region36: #{tpu_custom_call.1} parent=1 // loop_exit
      _
    %v364 = vld [vmem:[#allocation8] sm:$0xff]
    %v365 = vadd.f32 %v364, %v100
    %366 = vst [vmem:[#allocation8] sm:$0xff] %v365
    %s367 = scalar_lea.vmem [#allocation8], 8
    %v368 = vld [vmem:[%s367] sm:$0xff]
    %v369 = vadd.f32 %v368, %v101
    %370 = vst [vmem:[%s367] sm:$0xff] %v369
    %s371 = scalar_lea.vmem [#allocation8], 16
    %v372 = vld [vmem:[%s371] sm:$0xff]
    %v373 = vadd.f32 %v372, %v102
    %374 = vst [vmem:[%s371] sm:$0xff] %v373
    %s375 = scalar_lea.vmem [#allocation8], 24
    %v376 = vld [vmem:[%s375] sm:$0xff]
    %v377 = vadd.f32 %v376, %v103
    %378 = vst [vmem:[%s375] sm:$0xff] %v377
    // Predicated region
    $region37: #{tpu_custom_call.1} parent=1 // pred_check
      _
    $region38: #{tpu_custom_call.1} parent=1 // pred_check_branch
      %380 = sbr.rel (0) target = $region40
    $region39: #{tpu_custom_call.1} parent=1 // pred_region
      %s382 = ssub.s32 512, 512
      %383 = vsyncadd [#allocation4], %s382
      %s384 = sshll.u32 [#allocation8], 4
      %s385 = int_to_ptr.vmem [resolvable:$true] %s384
      %390 = dma.vmem_to_hbm [thread:$0]  %s385, 512, %s3, [#allocation4], 128, 128, 8
    $region40: #{tpu_custom_call.1} parent=1 // pred_fallthru
      _
    // Predicated region
    $region41: #{tpu_custom_call.1} parent=1 // pred_check
      _
    $region42: #{tpu_custom_call.1} parent=1 // pred_check_branch
      %392 = sbr.rel (0) target = $region44
    $region43: #{tpu_custom_call.1} parent=1 // pred_region
      %393 = dma.done [#allocation4], 512
    $region44: #{tpu_custom_call.1} parent=1 // pred_fallthru
      _
    %394 = vsyncpa [#allocation3], 1
    %395 = vsyncpa [#allocation6], 1
    %396 = vsyncpa [#allocation4], 1

</llo_original>
